<compile_context>
chip_gen: v7x
topology: tpu7x:2x2x1
jax: 0.10.0
libtpu: 0.0.40
codegen_flags: <defaults>
</compile_context>

<pallas_src>
import functools

import jax
import jax.numpy as jnp
from jax import lax
from jax.experimental import pallas as pl
from jax.experimental.pallas import tpu as pltpu

GAMMA = 2                       # module hyperparameter (integer-valued)
CONF_MARGIN = 1.2
ALPHA = 0.75
TC = 128                        # lane width
MAX_TR = 2048                   # row-tile cap: 2 in * 2 buf * 2048*128*4B = 4 MiB


def _pick_tile(rows, max_tr=MAX_TR):
    """Largest divisor of `rows` that is a multiple of 8 and <= max_tr."""
    tr = min(rows, max_tr)
    while rows % tr:
        tr -= 8
    return tr


def _make_kernel(hard_labels):
    def kernel(mu_ref, inv_sigma_ref, yp_ref, yt_ref, out_ref, acc_ref):
        i = pl.program_id(0)

        @pl.when(i == 0)
        def _():
            acc_ref[...] = jnp.zeros_like(acc_ref)

        yp = yp_ref[...]
        yt = yt_ref[...]
        mu = mu_ref[0, 0]
        inv_sigma = inv_sigma_ref[0, 0]

        # deviation (divide hoisted to a reciprocal multiply)
        dev = (yp - mu) * inv_sigma

        if hard_labels:
            # yt is exactly 0/1: one tanh + one log per element.
            is_pos = yt > 0.5
            t = jnp.tanh(jnp.where(is_pos, CONF_MARGIN - dev, dev))
            t2 = t * t
            loss = jnp.where(is_pos, t2, t2 * t2)          # outlier: ^2, inlier: ^4
            lg = jnp.log(jnp.where(is_pos, yp, 1.0 - yp))
            coef = jnp.where(
                is_pos,
                -ALPHA * lax.integer_pow(1.0 - yp, GAMMA),
                -(1.0 - ALPHA) * lax.integer_pow(yp, GAMMA))
            f1 = coef * lg
        else:
            # general (soft-label) form: exact module semantics.
            inlier = lax.integer_pow(jnp.tanh(dev), 2 * GAMMA)
            outlier = lax.integer_pow(jnp.tanh(CONF_MARGIN - dev), 2)
            loss = (1.0 - yt) * inlier + yt * outlier
            f1 = (-ALPHA * lax.integer_pow(1.0 - yp, GAMMA) * yt * jnp.log(yp)
                  - (1.0 - ALPHA) * lax.integer_pow(yp, GAMMA) * (1.0 - yt)
                  * jnp.log(1.0 - yp))

        # Per-lane/per-row partial accumulation: pure VPU adds each step.
        acc_ref[...] += 0.5 * loss + 0.5 * f1

        # Single cross-lane reduction, only on the final grid step.
        @pl.when(i == pl.num_programs(0) - 1)
        def _():
            out_ref[0, 0] = jnp.sum(acc_ref[...])

    return kernel


def deviation_embed_f1_loss(y_pred, y_true, key, *, hard_labels=False):
    """y_pred, y_true: f32 arrays of shape (R, 128) with R % 8 == 0.

    hard_labels=True enables the fused 1-tanh/1-log path; only valid when
    y_true contains exactly 0s and 1s.
    """
    R, C = y_pred.shape
    assert C == TC and R % 8 == 0

    # reference distribution stats (glue, not the hot path)
    # TODO(synk): in-kernel RNG via pltpu.prng_* is possible but the 5000-sample
    # reference stats are cheap host/XLA work, so they stay in the wrapper.
    ref = 0.1 + 1.0 * jax.random.normal(key, (5000,), dtype=jnp.float32)
    ref_mean = jnp.mean(ref).reshape(1, 1)
    ref_inv_std = (1.0 / jnp.std(ref, ddof=1)).reshape(1, 1)  # torch.std is unbiased

    tr = _pick_tile(R)
    grid = (R // tr,)

    total = pl.pallas_call(
        _make_kernel(hard_labels),
        out_shape=jax.ShapeDtypeStruct((1, 1), jnp.float32),
        grid_spec=pltpu.PrefetchScalarGridSpec(
            num_scalar_prefetch=0,
            grid=grid,
            in_specs=[
                pl.BlockSpec((1, 1), lambda i: (0, 0),
                             memory_space=pltpu.MemorySpace.SMEM),
                pl.BlockSpec((1, 1), lambda i: (0, 0),
                             memory_space=pltpu.MemorySpace.SMEM),
                pl.BlockSpec((tr, TC), lambda i: (i, 0)),
                pl.BlockSpec((tr, TC), lambda i: (i, 0)),
            ],
            out_specs=pl.BlockSpec((1, 1), lambda i: (0, 0),
                                   memory_space=pltpu.MemorySpace.SMEM),
            scratch_shapes=[pltpu.VMEM((tr, TC), jnp.float32)],
        ),
        compiler_params=pltpu.CompilerParams(
            dimension_semantics=("arbitrary",)),
    )(ref_mean, ref_inv_std, y_pred, y_true)

    return total[0, 0] / jnp.float32(R * C)


def _reference(y_pred, y_true, key):
    """Pure-JAX reference mirroring the PyTorch forward exactly."""
    ref = 0.1 + 1.0 * jax.random.normal(key, (5000,), dtype=jnp.float32)
    dev = (y_pred - jnp.mean(ref)) / jnp.std(ref, ddof=1)
    inlier = jnp.tanh(dev) ** (GAMMA * 2)
    outlier = jnp.tanh(CONF_MARGIN - dev) ** 2
    loss = (1.0 - y_true) * inlier + y_true * outlier
    f1 = jnp.mean(-ALPHA * (1.0 - y_pred) ** GAMMA * y_true * jnp.log(y_pred)
                  - (1.0 - ALPHA) * y_pred ** GAMMA * (1.0 - y_true)
                  * jnp.log(1.0 - y_pred))
    return jnp.mean(0.5 * loss + 0.5 * f1)


if __name__ == "__main__":
    key = jax.random.PRNGKey(0)
    k_ref, k_pred, k_true = jax.random.split(key, 3)

    R, C = 64, 128
    # predictions in (0, 1) so the log terms are well defined
    y_pred = jax.nn.sigmoid(
        jax.random.normal(k_pred, (R, C), dtype=jnp.float32))
    y_true = (jax.random.uniform(k_true, (R, C)) < 0.3).astype(jnp.float32)

    ref_out = _reference(y_pred, y_true, k_ref)

    # exact module semantics (soft-label-safe path)
    out_soft = jax.block_until_ready(
        deviation_embed_f1_loss(y_pred, y_true, k_ref, hard_labels=False))
    assert jnp.allclose(out_soft, ref_out, rtol=1e-5, atol=1e-5), (out_soft, ref_out)

    # fused EUP-halved path (valid here: labels are exactly 0/1)
    out_hard = jax.block_until_ready(
        deviation_embed_f1_loss(y_pred, y_true, k_ref, hard_labels=True))
    assert jnp.allclose(out_hard, ref_out, rtol=1e-5, atol=1e-5), (out_hard, ref_out)

    print("KERNEL_OK")
</pallas_src>

<mosaic_0001>
module attributes {stable_mosaic.version = 11 : i64} {
  func.func @kernel(%arg0: i32, %arg1: memref<1x1xf32, #tpu.memory_space<smem>>, %arg2: memref<1x1xf32, #tpu.memory_space<smem>>, %arg3: memref<64x128xf32, #tpu.memory_space<vmem>>, %arg4: memref<64x128xf32, #tpu.memory_space<vmem>>, %arg5: memref<1x1xf32, #tpu.memory_space<smem>>, %arg6: memref<64x128xf32, #tpu.memory_space<vmem>>) attributes {dimension_semantics = [#tpu.dimension_semantics<arbitrary>], iteration_bounds = array<i64: 1>, scalar_prefetch = 0 : i64, scratch_operands = 1 : i64, tpu.core_type = #tpu.core_type<tc>, window_params = [{transform_indices = @transform_0, window_bounds = array<i64: 1, 1>}, {transform_indices = @transform_1, window_bounds = array<i64: 1, 1>}, {transform_indices = @transform_2, window_bounds = array<i64: 64, 128>}, {transform_indices = @transform_3, window_bounds = array<i64: 64, 128>}, {transform_indices = @transform_4, window_bounds = array<i64: 1, 1>}]} {
    %c0_i32 = arith.constant 0 : i32
    %0 = arith.cmpi eq, %arg0, %c0_i32 : i32
    %1 = arith.extui %0 : i1 to i32
    %c0_i32_0 = arith.constant 0 : i32
    %2 = arith.cmpi ne, %1, %c0_i32_0 : i32
    scf.if %2 {
      %cst_22 = arith.constant 0.000000e+00 : f32
      %53 = vector.broadcast %cst_22 : f32 to vector<64x128xf32>
      %c0_23 = arith.constant 0 : index
      %c0_24 = arith.constant 0 : index
      %54 = vector.load %arg6[%c0_23, %c0_24] : memref<64x128xf32, #tpu.memory_space<vmem>>, vector<64x128xf32>
      tpu.vector_store %arg6[%c0_23, %c0_24], %53 {strides = array<i32>} : memref<64x128xf32, #tpu.memory_space<vmem>>, vector<64x128xf32>,
    } else {
    }
    %c0 = arith.constant 0 : index
    %c0_1 = arith.constant 0 : index
    %3 = vector.load %arg3[%c0, %c0_1] : memref<64x128xf32, #tpu.memory_space<vmem>>, vector<64x128xf32>
    %c0_2 = arith.constant 0 : index
    %c0_3 = arith.constant 0 : index
    %4 = vector.load %arg4[%c0_2, %c0_3] : memref<64x128xf32, #tpu.memory_space<vmem>>, vector<64x128xf32>
    %c0_4 = arith.constant 0 : index
    %c0_5 = arith.constant 0 : index
    %5 = memref.load %arg1[%c0_4, %c0_5] : memref<1x1xf32, #tpu.memory_space<smem>>
    %c0_6 = arith.constant 0 : index
    %c0_7 = arith.constant 0 : index
    %6 = memref.load %arg2[%c0_6, %c0_7] : memref<1x1xf32, #tpu.memory_space<smem>>
    %7 = vector.broadcast %5 : f32 to vector<64x128xf32>
    %8 = arith.subf %3, %7 : vector<64x128xf32>
    %9 = vector.broadcast %6 : f32 to vector<64x128xf32>
    %10 = arith.mulf %8, %9 : vector<64x128xf32>
    %11 = math.tanh %10 : vector<64x128xf32>
    %12 = arith.mulf %11, %11 : vector<64x128xf32>
    %13 = arith.mulf %12, %12 : vector<64x128xf32>
    %cst = arith.constant 1.200000e+00 : f32
    %14 = vector.broadcast %cst : f32 to vector<64x128xf32>
    %15 = arith.subf %14, %10 : vector<64x128xf32>
    %16 = math.tanh %15 : vector<64x128xf32>
    %17 = arith.mulf %16, %16 : vector<64x128xf32>
    %cst_8 = arith.constant 1.000000e+00 : f32
    %18 = vector.broadcast %cst_8 : f32 to vector<64x128xf32>
    %19 = arith.subf %18, %4 : vector<64x128xf32>
    %20 = arith.mulf %19, %13 : vector<64x128xf32>
    %21 = arith.mulf %4, %17 : vector<64x128xf32>
    %22 = arith.addf %20, %21 : vector<64x128xf32>
    %cst_9 = arith.constant 1.000000e+00 : f32
    %23 = vector.broadcast %cst_9 : f32 to vector<64x128xf32>
    %24 = arith.subf %23, %3 : vector<64x128xf32>
    %25 = arith.mulf %24, %24 : vector<64x128xf32>
    %cst_10 = arith.constant -7.500000e-01 : f32
    %26 = vector.broadcast %cst_10 : f32 to vector<64x128xf32>
    %27 = arith.mulf %26, %25 : vector<64x128xf32>
    %28 = arith.mulf %27, %4 : vector<64x128xf32>
    %29 = math.log %3 : vector<64x128xf32>
    %30 = arith.mulf %28, %29 : vector<64x128xf32>
    %31 = arith.mulf %3, %3 : vector<64x128xf32>
    %cst_11 = arith.constant 2.500000e-01 : f32
    %32 = vector.broadcast %cst_11 : f32 to vector<64x128xf32>
    %33 = arith.mulf %32, %31 : vector<64x128xf32>
    %cst_12 = arith.constant 1.000000e+00 : f32
    %34 = vector.broadcast %cst_12 : f32 to vector<64x128xf32>
    %35 = arith.subf %34, %4 : vector<64x128xf32>
    %36 = arith.mulf %33, %35 : vector<64x128xf32>
    %cst_13 = arith.constant 1.000000e+00 : f32
    %37 = vector.broadcast %cst_13 : f32 to vector<64x128xf32>
    %38 = arith.subf %37, %3 : vector<64x128xf32>
    %39 = math.log %38 : vector<64x128xf32>
    %40 = arith.mulf %36, %39 : vector<64x128xf32>
    %41 = arith.subf %30, %40 : vector<64x128xf32>
    %c0_14 = arith.constant 0 : index
    %c0_15 = arith.constant 0 : index
    %42 = vector.load %arg6[%c0_14, %c0_15] : memref<64x128xf32, #tpu.memory_space<vmem>>, vector<64x128xf32>
    %cst_16 = arith.constant 5.000000e-01 : f32
    %43 = vector.broadcast %cst_16 : f32 to vector<64x128xf32>
    %44 = arith.mulf %43, %22 : vector<64x128xf32>
    %cst_17 = arith.constant 5.000000e-01 : f32
    %45 = vector.broadcast %cst_17 : f32 to vector<64x128xf32>
    %46 = arith.mulf %45, %41 : vector<64x128xf32>
    %47 = arith.addf %44, %46 : vector<64x128xf32>
    %48 = arith.addf %42, %47 : vector<64x128xf32>
    %c0_18 = arith.constant 0 : index
    %c0_19 = arith.constant 0 : index
    %49 = vector.load %arg6[%c0_18, %c0_19] : memref<64x128xf32, #tpu.memory_space<vmem>>, vector<64x128xf32>
    tpu.vector_store %arg6[%c0_18, %c0_19], %48 {strides = array<i32>} : memref<64x128xf32, #tpu.memory_space<vmem>>, vector<64x128xf32>,
    %c0_i32_20 = arith.constant 0 : i32
    %50 = arith.cmpi eq, %arg0, %c0_i32_20 : i32
    %51 = arith.extui %50 : i1 to i32
    %c0_i32_21 = arith.constant 0 : i32
    %52 = arith.cmpi ne, %51, %c0_i32_21 : i32
    scf.if %52 {
      %c0_22 = arith.constant 0 : index
      %c0_23 = arith.constant 0 : index
      %53 = vector.load %arg6[%c0_22, %c0_23] : memref<64x128xf32, #tpu.memory_space<vmem>>, vector<64x128xf32>
      %54 = vector.shape_cast %53 : vector<64x128xf32> to vector<1x64x128xf32>
      %cst_24 = arith.constant dense<0.000000e+00> : vector<1xf32>
      %55 = vector.multi_reduction <add>, %54, %cst_24 [1, 2] : vector<1x64x128xf32> to vector<1xf32>
      %56 = vector.shape_cast %55 : vector<1xf32> to vector<1x1x1xf32>
      %57 = vector.extract %56[0, 0, 0] : f32 from vector<1x1x1xf32>
      %c0_25 = arith.constant 0 : index
      %c0_26 = arith.constant 0 : index
      %58 = memref.load %arg5[%c0_25, %c0_26] : memref<1x1xf32, #tpu.memory_space<smem>>
      memref.store %57, %arg5[%c0_25, %c0_26] : memref<1x1xf32, #tpu.memory_space<smem>>
    } else {
    }
    return
  }
  func.func @transform_0(%arg0: i32) -> (i32, i32) {
    %c0_i32 = arith.constant 0 : i32
    %c0_i32_0 = arith.constant 0 : i32
    %c0_i32_1 = arith.constant 0 : i32
    return %c0_i32, %c0_i32_0 : i32, i32
  }
  func.func @transform_1(%arg0: i32) -> (i32, i32) {
    %c0_i32 = arith.constant 0 : i32
    %c0_i32_0 = arith.constant 0 : i32
    %c0_i32_1 = arith.constant 0 : i32
    return %c0_i32, %c0_i32_0 : i32, i32
  }
  func.func @transform_2(%arg0: i32) -> (i32, i32) {
    %c0_i32 = arith.constant 0 : i32
    %c0_i32_0 = arith.constant 0 : i32
    return %arg0, %c0_i32 : i32, i32
  }
  func.func @transform_3(%arg0: i32) -> (i32, i32) {
    %c0_i32 = arith.constant 0 : i32
    %c0_i32_0 = arith.constant 0 : i32
    return %arg0, %c0_i32 : i32, i32
  }
  func.func @transform_4(%arg0: i32) -> (i32, i32) {
    %c0_i32 = arith.constant 0 : i32
    %c0_i32_0 = arith.constant 0 : i32
    %c0_i32_1 = arith.constant 0 : i32
    return %c0_i32, %c0_i32_0 : i32, i32
  }
}

</mosaic_0001>

<llo_original>
// kernel: tpu_custom_call.1
$region0: #{tpu_custom_call.1}
  #allocation0 [shape = 'u32[]', space=smem, size = 0x4, offset = 0x4, fixed_abs, tag = 'smem constant byte address 0x4 - core index']
  #allocation1 [shape = 'u32[144,128]{1,0:T(1,128)}', space=vmem, size = 0x12000, scoped, tag = 'internal scratch']
  #allocation2 [shape = 'f32[64,128]{1,0:T(8,128)}', space=vmem, size = 0x8000, scoped, tag = 'scratch operand']
  #allocation3 [shape = 'f32[1,1]{1,0:T(1,128)S(6)}', space=smem, size = 0x200, scoped, tag = 'scoped memory for tpu_custom_call.1']
  #allocation4 [shape = 'f32[1,1]{1,0:T(1,128)S(6)}', space=smem, size = 0x200, scoped, tag = 'scoped memory for tpu_custom_call.1']
  %s0 = inlined_call_operand.<no memory space> [shape: f32[1,1], index: 0, kind: input, shape index: {}]
  %s1 = inlined_call_operand.<no memory space> [shape: f32[1,1], index: 1, kind: input, shape index: {}]
  %s2 = inlined_call_operand.hbm [shape: f32[64,128], index: 2, kind: input, shape index: {}]
  %s3 = inlined_call_operand.hbm [shape: f32[64,128], index: 3, kind: input, shape index: {}]
  %s4 = inlined_call_operand.hbm [shape: f32[1,1], index: 4, kind: output, shape index: {}]
  %s5 = sld [smem:[#allocation0]]
  $region42: #{tpu_custom_call.1} parent=0
    _
  %s7 = ssub.s32 1, %s5
  %s8 = scalar_select 0, %s7, %s5
  %9 = sst [smem:[#allocation3]] %s0
  %10 = sst [smem:[#allocation4]] %s1
  $region1: #{tpu_custom_call.1} parent=0
    #allocation5 [shape = 'u8[32768]{0}', space=vmem, size = 0x8000, scoped, tag = 'input window, operand 2, single buffered']
    #allocation6 [shape = 's32[1]{0}', space=sflag, size = 0x4, scoped, tag = 'scoped memory for tpu_custom_call.1']
    #allocation7 [shape = 's32[1]{0}', space=sflag, size = 0x4, scoped, tag = 'scoped memory for tpu_custom_call.1']
    #allocation8 [shape = 'u8[32768]{0}', space=vmem, size = 0x8000, scoped, tag = 'input window, operand 3, single buffered']
    #allocation9 [shape = 's32[1]{0}', space=sflag, size = 0x4, scoped, tag = 'scoped memory for tpu_custom_call.1']
    #allocation10 [shape = 'u8[512]{0}', space=smem, size = 0x200, scoped, tag = 'output window, operand 0, single buffered']
    %11 = vsyncpa [#allocation6], 0
    %12 = vsyncpa [#allocation9], 0
    %13 = vsyncpa [#allocation7], 0
    // Predicated region
    $region2: #{tpu_custom_call.1} parent=1 // pred_check
      _
    $region3: #{tpu_custom_call.1} parent=1 // pred_check_branch
      %15 = sbr.rel (0) target = $region5
    $region4: #{tpu_custom_call.1} parent=1 // pred_region
      _
    $region5: #{tpu_custom_call.1} parent=1 // pred_fallthru
      _
    // Predicated region
    $region6: #{tpu_custom_call.1} parent=1 // pred_check
      _
    $region7: #{tpu_custom_call.1} parent=1 // pred_check_branch
      %17 = sbr.rel (0) target = $region9
    $region8: #{tpu_custom_call.1} parent=1 // pred_region
      _
    $region9: #{tpu_custom_call.1} parent=1 // pred_fallthru
      _
    // Predicated region
    $region10: #{tpu_custom_call.1} parent=1 // pred_check
      _
    $region11: #{tpu_custom_call.1} parent=1 // pred_check_branch
      %19 = sbr.rel (0) target = $region13
    $region12: #{tpu_custom_call.1} parent=1 // pred_region
      %s21 = ssub.s32 1024, 1024
      %22 = vsyncadd [#allocation6], %s21
      %s23 = sshll.u32 [#allocation5], 4
      %s24 = int_to_ptr.vmem [resolvable:$true] %s23
      %29 = dma.hbm_to_vmem [thread:$0]  %s2, 1024, %s24, [#allocation6], 128, 128, 8
    $region13: #{tpu_custom_call.1} parent=1 // pred_fallthru
      _
    // Predicated region
    $region14: #{tpu_custom_call.1} parent=1 // pred_check
      _
    $region15: #{tpu_custom_call.1} parent=1 // pred_check_branch
      %31 = sbr.rel (0) target = $region17
    $region16: #{tpu_custom_call.1} parent=1 // pred_region
      %s33 = ssub.s32 1024, 1024
      %34 = vsyncadd [#allocation9], %s33
      %s35 = sshll.u32 [#allocation8], 4
      %s36 = int_to_ptr.vmem [resolvable:$true] %s35
      %41 = dma.hbm_to_vmem [thread:$0]  %s3, 1024, %s36, [#allocation9], 128, 128, 8
    $region17: #{tpu_custom_call.1} parent=1 // pred_fallthru
      _
    // Predicated region
    $region18: #{tpu_custom_call.1} parent=1 // pred_check
      _
    $region19: #{tpu_custom_call.1} parent=1 // pred_check_branch
      %43 = sbr.rel (0) target = $region21
    $region20: #{tpu_custom_call.1} parent=1 // pred_region
      %44 = dma.done [#allocation6], 1024
    $region21: #{tpu_custom_call.1} parent=1 // pred_fallthru
      _
    // Predicated region
    $region22: #{tpu_custom_call.1} parent=1 // pred_check
      _
    $region23: #{tpu_custom_call.1} parent=1 // pred_check_branch
      %46 = sbr.rel (0) target = $region25
    $region24: #{tpu_custom_call.1} parent=1 // pred_region
      %47 = dma.done [#allocation9], 1024
    $region25: #{tpu_custom_call.1} parent=1 // pred_fallthru
      _
    %p48 = scmp.eq.s32.totalorder 0, 0
    // Predicated region
    $region26: #{tpu_custom_call.1} parent=1 // pred_check
      %p49 = pneg %p48
    $region27: #{tpu_custom_call.1} parent=1 // pred_check_branch
      %51 = sbr.rel (%p49) target = $region29
    $region28: #{tpu_custom_call.1} parent=1 // pred_region
      %52 = vst [vmem:[#allocation2] sm:$0xff] 0.0
      %53 = vst [vmem:[#allocation2 + $0x8] sm:$0xff] 0.0
      %54 = vst [vmem:[#allocation2 + $0x10] sm:$0xff] 0.0
      %55 = vst [vmem:[#allocation2 + $0x18] sm:$0xff] 0.0
      %56 = vst [vmem:[#allocation2 + $0x20] sm:$0xff] 0.0
      %57 = vst [vmem:[#allocation2 + $0x28] sm:$0xff] 0.0
      %58 = vst [vmem:[#allocation2 + $0x30] sm:$0xff] 0.0
      %59 = vst [vmem:[#allocation2 + $0x38] sm:$0xff] 0.0
    $region29: #{tpu_custom_call.1} parent=1 // pred_fallthru
      _
    %v60 = vld [vmem:[#allocation5] sm:$0xff]
    %v61 = vld [vmem:[#allocation5 + $0x8] sm:$0xff]
    %v62 = vld [vmem:[#allocation5 + $0x10] sm:$0xff]
    %v63 = vld [vmem:[#allocation5 + $0x18] sm:$0xff]
    %v64 = vld [vmem:[#allocation5 + $0x20] sm:$0xff]
    %v65 = vld [vmem:[#allocation5 + $0x28] sm:$0xff]
    %v66 = vld [vmem:[#allocation5 + $0x30] sm:$0xff]
    %v67 = vld [vmem:[#allocation5 + $0x38] sm:$0xff]
    %v68 = vld [vmem:[#allocation8] sm:$0xff]
    %v69 = vld [vmem:[#allocation8 + $0x8] sm:$0xff]
    %v70 = vld [vmem:[#allocation8 + $0x10] sm:$0xff]
    %v71 = vld [vmem:[#allocation8 + $0x18] sm:$0xff]
    %v72 = vld [vmem:[#allocation8 + $0x20] sm:$0xff]
    %v73 = vld [vmem:[#allocation8 + $0x28] sm:$0xff]
    %v74 = vld [vmem:[#allocation8 + $0x30] sm:$0xff]
    %v75 = vld [vmem:[#allocation8 + $0x38] sm:$0xff]
    %s76 = sld [smem:[#allocation3]]
    %s77 = sld [smem:[#allocation4]]
    %v78 = vstv %s76
    %v79 = vsub.f32 %v60, %v78
    %v80 = vsub.f32 %v61, %v78
    %v81 = vsub.f32 %v62, %v78
    %v82 = vsub.f32 %v63, %v78
    %v83 = vsub.f32 %v64, %v78
    %v84 = vsub.f32 %v65, %v78
    %v85 = vsub.f32 %v66, %v78
    %v86 = vsub.f32 %v67, %v78
    %v87 = vstv %s77
    %v88 = vmul.f32 %v79, %v87
    %v89 = vmul.f32 %v80, %v87
    %v90 = vmul.f32 %v81, %v87
    %v91 = vmul.f32 %v82, %v87
    %v92 = vmul.f32 %v83, %v87
    %v93 = vmul.f32 %v84, %v87
    %v94 = vmul.f32 %v85, %v87
    %v95 = vmul.f32 %v86, %v87
    %v96 = vtanh.pop %v88
    %v97 = vtanh.pop %v89
    %v98 = vtanh.pop %v90
    %v99 = vtanh.pop %v91
    %v100 = vtanh.pop %v92
    %v101 = vtanh.pop %v93
    %v102 = vtanh.pop %v94
    %v103 = vtanh.pop %v95
    %v104 = vmul.f32 %v96, %v96
    %v105 = vmul.f32 %v97, %v97
    %v106 = vmul.f32 %v98, %v98
    %v107 = vmul.f32 %v99, %v99
    %v108 = vmul.f32 %v100, %v100
    %v109 = vmul.f32 %v101, %v101
    %v110 = vmul.f32 %v102, %v102
    %v111 = vmul.f32 %v103, %v103
    %v112 = vmul.f32 %v104, %v104
    %v113 = vmul.f32 %v105, %v105
    %v114 = vmul.f32 %v106, %v106
    %v115 = vmul.f32 %v107, %v107
    %v116 = vmul.f32 %v108, %v108
    %v117 = vmul.f32 %v109, %v109
    %v118 = vmul.f32 %v110, %v110
    %v119 = vmul.f32 %v111, %v111
    %v120 = vsub.f32 1.2, %v88
    %v121 = vsub.f32 1.2, %v89
    %v122 = vsub.f32 1.2, %v90
    %v123 = vsub.f32 1.2, %v91
    %v124 = vsub.f32 1.2, %v92
    %v125 = vsub.f32 1.2, %v93
    %v126 = vsub.f32 1.2, %v94
    %v127 = vsub.f32 1.2, %v95
    %v128 = vtanh.pop %v120
    %v129 = vtanh.pop %v121
    %v130 = vtanh.pop %v122
    %v131 = vtanh.pop %v123
    %v132 = vtanh.pop %v124
    %v133 = vtanh.pop %v125
    %v134 = vtanh.pop %v126
    %v135 = vtanh.pop %v127
    %v136 = vmul.f32 %v128, %v128
    %v137 = vmul.f32 %v129, %v129
    %v138 = vmul.f32 %v130, %v130
    %v139 = vmul.f32 %v131, %v131
    %v140 = vmul.f32 %v132, %v132
    %v141 = vmul.f32 %v133, %v133
    %v142 = vmul.f32 %v134, %v134
    %v143 = vmul.f32 %v135, %v135
    %v144 = vsub.f32 1.0, %v68
    %v145 = vsub.f32 1.0, %v69
    %v146 = vsub.f32 1.0, %v70
    %v147 = vsub.f32 1.0, %v71
    %v148 = vsub.f32 1.0, %v72
    %v149 = vsub.f32 1.0, %v73
    %v150 = vsub.f32 1.0, %v74
    %v151 = vsub.f32 1.0, %v75
    %v152 = vmul.f32 %v144, %v112
    %v153 = vmul.f32 %v145, %v113
    %v154 = vmul.f32 %v146, %v114
    %v155 = vmul.f32 %v147, %v115
    %v156 = vmul.f32 %v148, %v116
    %v157 = vmul.f32 %v149, %v117
    %v158 = vmul.f32 %v150, %v118
    %v159 = vmul.f32 %v151, %v119
    %v160 = vmul.f32 %v68, %v136
    %v161 = vmul.f32 %v69, %v137
    %v162 = vmul.f32 %v70, %v138
    %v163 = vmul.f32 %v71, %v139
    %v164 = vmul.f32 %v72, %v140
    %v165 = vmul.f32 %v73, %v141
    %v166 = vmul.f32 %v74, %v142
    %v167 = vmul.f32 %v75, %v143
    %v168 = vadd.f32 %v152, %v160
    %v169 = vadd.f32 %v153, %v161
    %v170 = vadd.f32 %v154, %v162
    %v171 = vadd.f32 %v155, %v163
    %v172 = vadd.f32 %v156, %v164
    %v173 = vadd.f32 %v157, %v165
    %v174 = vadd.f32 %v158, %v166
    %v175 = vadd.f32 %v159, %v167
    %v176 = vsub.f32 1.0, %v60
    %v177 = vsub.f32 1.0, %v61
    %v178 = vsub.f32 1.0, %v62
    %v179 = vsub.f32 1.0, %v63
    %v180 = vsub.f32 1.0, %v64
    %v181 = vsub.f32 1.0, %v65
    %v182 = vsub.f32 1.0, %v66
    %v183 = vsub.f32 1.0, %v67
    %v184 = vmul.f32 %v176, %v176
    %v185 = vmul.f32 %v177, %v177
    %v186 = vmul.f32 %v178, %v178
    %v187 = vmul.f32 %v179, %v179
    %v188 = vmul.f32 %v180, %v180
    %v189 = vmul.f32 %v181, %v181
    %v190 = vmul.f32 %v182, %v182
    %v191 = vmul.f32 %v183, %v183
    %v192 = vmul.f32 %v184, -0.75
    %v193 = vmul.f32 %v185, -0.75
    %v194 = vmul.f32 %v186, -0.75
    %v195 = vmul.f32 %v187, -0.75
    %v196 = vmul.f32 %v188, -0.75
    %v197 = vmul.f32 %v189, -0.75
    %v198 = vmul.f32 %v190, -0.75
    %v199 = vmul.f32 %v191, -0.75
    %v200 = vmul.f32 %v192, %v68
    %v201 = vmul.f32 %v193, %v69
    %v202 = vmul.f32 %v194, %v70
    %v203 = vmul.f32 %v195, %v71
    %v204 = vmul.f32 %v196, %v72
    %v205 = vmul.f32 %v197, %v73
    %v206 = vmul.f32 %v198, %v74
    %v207 = vmul.f32 %v199, %v75
    %v208 = vlog2.pop %v60
    %v209 = vmul.f32 %v208, 0.6931472
    %v210 = vlog2.pop %v61
    %v211 = vmul.f32 %v210, 0.6931472
    %v212 = vlog2.pop %v62
    %v213 = vmul.f32 %v212, 0.6931472
    %v214 = vlog2.pop %v63
    %v215 = vmul.f32 %v214, 0.6931472
    %v216 = vlog2.pop %v64
    %v217 = vmul.f32 %v216, 0.6931472
    %v218 = vlog2.pop %v65
    %v219 = vmul.f32 %v218, 0.6931472
    %v220 = vlog2.pop %v66
    %v221 = vmul.f32 %v220, 0.6931472
    %v222 = vlog2.pop %v67
    %v223 = vmul.f32 %v222, 0.6931472
    %v224 = vmul.f32 %v200, %v209
    %v225 = vmul.f32 %v201, %v211
    %v226 = vmul.f32 %v202, %v213
    %v227 = vmul.f32 %v203, %v215
    %v228 = vmul.f32 %v204, %v217
    %v229 = vmul.f32 %v205, %v219
    %v230 = vmul.f32 %v206, %v221
    %v231 = vmul.f32 %v207, %v223
    %v232 = vmul.f32 %v60, %v60
    %v233 = vmul.f32 %v61, %v61
    %v234 = vmul.f32 %v62, %v62
    %v235 = vmul.f32 %v63, %v63
    %v236 = vmul.f32 %v64, %v64
    %v237 = vmul.f32 %v65, %v65
    %v238 = vmul.f32 %v66, %v66
    %v239 = vmul.f32 %v67, %v67
    %v240 = vmul.f32 %v232, 0.25
    %v241 = vmul.f32 %v233, 0.25
    %v242 = vmul.f32 %v234, 0.25
    %v243 = vmul.f32 %v235, 0.25
    %v244 = vmul.f32 %v236, 0.25
    %v245 = vmul.f32 %v237, 0.25
    %v246 = vmul.f32 %v238, 0.25
    %v247 = vmul.f32 %v239, 0.25
    %v248 = vmul.f32 %v240, %v144
    %v249 = vmul.f32 %v241, %v145
    %v250 = vmul.f32 %v242, %v146
    %v251 = vmul.f32 %v243, %v147
    %v252 = vmul.f32 %v244, %v148
    %v253 = vmul.f32 %v245, %v149
    %v254 = vmul.f32 %v246, %v150
    %v255 = vmul.f32 %v247, %v151
    %v256 = vlog2.pop %v176
    %v257 = vmul.f32 %v256, 0.6931472
    %v258 = vlog2.pop %v177
    %v259 = vmul.f32 %v258, 0.6931472
    %v260 = vlog2.pop %v178
    %v261 = vmul.f32 %v260, 0.6931472
    %v262 = vlog2.pop %v179
    %v263 = vmul.f32 %v262, 0.6931472
    %v264 = vlog2.pop %v180
    %v265 = vmul.f32 %v264, 0.6931472
    %v266 = vlog2.pop %v181
    %v267 = vmul.f32 %v266, 0.6931472
    %v268 = vlog2.pop %v182
    %v269 = vmul.f32 %v268, 0.6931472
    %v270 = vlog2.pop %v183
    %v271 = vmul.f32 %v270, 0.6931472
    %v272 = vmul.f32 %v248, %v257
    %v273 = vmul.f32 %v249, %v259
    %v274 = vmul.f32 %v250, %v261
    %v275 = vmul.f32 %v251, %v263
    %v276 = vmul.f32 %v252, %v265
    %v277 = vmul.f32 %v253, %v267
    %v278 = vmul.f32 %v254, %v269
    %v279 = vmul.f32 %v255, %v271
    %v280 = vsub.f32 %v224, %v272
    %v281 = vsub.f32 %v225, %v273
    %v282 = vsub.f32 %v226, %v274
    %v283 = vsub.f32 %v227, %v275
    %v284 = vsub.f32 %v228, %v276
    %v285 = vsub.f32 %v229, %v277
    %v286 = vsub.f32 %v230, %v278
    %v287 = vsub.f32 %v231, %v279
    %v288 = vld [vmem:[#allocation2] sm:$0xff]
    %v289 = vld [vmem:[#allocation2 + $0x8] sm:$0xff]
    %v290 = vld [vmem:[#allocation2 + $0x10] sm:$0xff]
    %v291 = vld [vmem:[#allocation2 + $0x18] sm:$0xff]
    %v292 = vld [vmem:[#allocation2 + $0x20] sm:$0xff]
    %v293 = vld [vmem:[#allocation2 + $0x28] sm:$0xff]
    %v294 = vld [vmem:[#allocation2 + $0x30] sm:$0xff]
    %v295 = vld [vmem:[#allocation2 + $0x38] sm:$0xff]
    %v296 = vmul.f32 %v168, 0.5
    %v297 = vmul.f32 %v169, 0.5
    %v298 = vmul.f32 %v170, 0.5
    %v299 = vmul.f32 %v171, 0.5
    %v300 = vmul.f32 %v172, 0.5
    %v301 = vmul.f32 %v173, 0.5
    %v302 = vmul.f32 %v174, 0.5
    %v303 = vmul.f32 %v175, 0.5
    %v304 = vmul.f32 %v280, 0.5
    %v305 = vmul.f32 %v281, 0.5
    %v306 = vmul.f32 %v282, 0.5
    %v307 = vmul.f32 %v283, 0.5
    %v308 = vmul.f32 %v284, 0.5
    %v309 = vmul.f32 %v285, 0.5
    %v310 = vmul.f32 %v286, 0.5
    %v311 = vmul.f32 %v287, 0.5
    %v312 = vadd.f32 %v296, %v304
    %v313 = vadd.f32 %v297, %v305
    %v314 = vadd.f32 %v298, %v306
    %v315 = vadd.f32 %v299, %v307
    %v316 = vadd.f32 %v300, %v308
    %v317 = vadd.f32 %v301, %v309
    %v318 = vadd.f32 %v302, %v310
    %v319 = vadd.f32 %v303, %v311
    %v320 = vadd.f32 %v288, %v312
    %v321 = vadd.f32 %v289, %v313
    %v322 = vadd.f32 %v290, %v314
    %v323 = vadd.f32 %v291, %v315
    %v324 = vadd.f32 %v292, %v316
    %v325 = vadd.f32 %v293, %v317
    %v326 = vadd.f32 %v294, %v318
    %v327 = vadd.f32 %v295, %v319
    %328 = vst [vmem:[#allocation2] sm:$0xff] %v320
    %329 = vst [vmem:[#allocation2 + $0x8] sm:$0xff] %v321
    %330 = vst [vmem:[#allocation2 + $0x10] sm:$0xff] %v322
    %331 = vst [vmem:[#allocation2 + $0x18] sm:$0xff] %v323
    %332 = vst [vmem:[#allocation2 + $0x20] sm:$0xff] %v324
    %333 = vst [vmem:[#allocation2 + $0x28] sm:$0xff] %v325
    %334 = vst [vmem:[#allocation2 + $0x30] sm:$0xff] %v326
    %335 = vst [vmem:[#allocation2 + $0x38] sm:$0xff] %v327
    // Predicated region
    $region30: #{tpu_custom_call.1} parent=1 // pred_check
      %p336 = pneg %p48
    $region31: #{tpu_custom_call.1} parent=1 // pred_check_branch
      %338 = sbr.rel (%p336) target = $region33
    $region32: #{tpu_custom_call.1} parent=1 // pred_region
      %v339 = vld [vmem:[#allocation2] sm:$0xff]
      %v340 = vld [vmem:[#allocation2 + $0x8] sm:$0xff]
      %v341 = vld [vmem:[#allocation2 + $0x10] sm:$0xff]
      %v342 = vld [vmem:[#allocation2 + $0x18] sm:$0xff]
      %v343 = vld [vmem:[#allocation2 + $0x20] sm:$0xff]
      %v344 = vld [vmem:[#allocation2 + $0x28] sm:$0xff]
      %v345 = vld [vmem:[#allocation2 + $0x30] sm:$0xff]
      %v346 = vld [vmem:[#allocation2 + $0x38] sm:$0xff]
      %v347 = vadd.f32 %v339, %v340
      %v348 = vadd.f32 %v347, %v341
      %v349 = vadd.f32 %v348, %v342
      %v350 = vadd.f32 %v349, %v343
      %v351 = vadd.f32 %v350, %v344
      %v352 = vadd.f32 %v351, %v345
      %v353 = vadd.f32 %v352, %v346
      %354 = vadd.xlane.f32.xlu0 %v353
      %v355 = vpop.xlane.xlu0 %354
      %v356 = vrot.slane %v355, 4
      %v357 = vadd.f32 %v355, %v356
      %v358 = vrot.slane %v357, 2
      %v359 = vadd.f32 %v357, %v358
      %v360 = vrot.slane %v359, 1
      %v361 = vadd.f32 %v359, %v360
      %s362 = vtos %v361
      %s363 = scalar_lea.smem [#allocation10], 0
      %364 = sst [smem:[%s363]] %s362
    $region33: #{tpu_custom_call.1} parent=1 // pred_fallthru
      _
    // Predicated region
    $region34: #{tpu_custom_call.1} parent=1 // pred_check
      _
    $region35: #{tpu_custom_call.1} parent=1 // pred_check_branch
      %366 = sbr.rel (0) target = $region37
    $region36: #{tpu_custom_call.1} parent=1 // pred_region
      %s368 = ssub.s32 16, 16
      %369 = vsyncadd [#allocation7], %s368
      %372 = dma.smem_to_hbm [#allocation10], 16, %s4, [#allocation7]
    $region37: #{tpu_custom_call.1} parent=1 // pred_fallthru
      _
    // Predicated region
    $region38: #{tpu_custom_call.1} parent=1 // pred_check
      _
    $region39: #{tpu_custom_call.1} parent=1 // pred_check_branch
      %374 = sbr.rel (0) target = $region41
    $region40: #{tpu_custom_call.1} parent=1 // pred_region
      %375 = dma.done [#allocation7], 16
    $region41: #{tpu_custom_call.1} parent=1 // pred_fallthru
      _
    %376 = sfence
    %377 = vsyncpa [#allocation6], 1
    %378 = vsyncpa [#allocation9], 1
    %379 = vsyncpa [#allocation7], 1

</llo_original>
